<compile_context>
chip_gen: v6e
topology: v6e:2x2x1
jax: 0.10.0
libtpu: 0.0.40
codegen_flags: <defaults>
</compile_context>

<pallas_src>
from functools import partial

import jax
import jax.numpy as jnp
from jax.experimental import pallas as pl
from jax.experimental.pallas import tpu as pltpu


def _round_up(x, m):
    return ((x + m - 1) // m) * m


# ----------------------------- Pallas kernel -------------------------------
def mae_kernel(patches_ref, maskf_ref, token_ref, w_ref, b_ref, out_ref):
    # patches_ref: (TILE_M, DIN_PAD) bf16   flattened patches
    # maskf_ref  : (TILE_M, 1)      f32    1.0 = masked patch
    # token_ref  : (1, DIN_PAD)     bf16   masked token (VMEM-resident)
    # w_ref      : (DIN_PAD, COUT_PAD) bf16  fused enc@dec weight (resident)
    # b_ref      : (1, COUT_PAD)    f32    fused bias (resident)
    m = maskf_ref[...] > 0.0                                   # (TILE_M, 1) bool

    # masked-token substitution: one vselect (exact for m in {0,1})
    xm = jnp.where(m, token_ref[...], patches_ref[...])        # (TILE_M, DIN_PAD) bf16

    # fused encoder+decoder: single MXU matmul, f32 accumulation
    acc = jnp.dot(xm, w_ref[...], preferred_element_type=jnp.float32)
    out_ref[...] = acc + b_ref[...]                            # lane-dense f32 store


# ------------------------------ JAX wrapper --------------------------------
def patchify_nhwc(x, ps):
    """NHWC image -> (N, num_patches, ps*ps*C), matching PyTorch ordering."""
    N, H, W, C = x.shape
    Hp, Wp = H // ps, W // ps
    p = x.reshape(N, Hp, ps, Wp, ps, C).transpose(0, 1, 3, 2, 4, 5)
    return p.reshape(N, Hp * Wp, ps * ps * C)


@partial(jax.jit, static_argnames=("patch_size",))
def mae_forward(x, mask_flags, masked_token, w_enc, b_enc, w_dec, b_dec,
                patch_size):
    N, H, W, C = x.shape
    Hp, Wp = H // patch_size, W // patch_size
    num_patches = Hp * Wp
    d_in = patch_size * patch_size * C
    dim = w_enc.shape[0]
    c_out = w_dec.shape[0]
    M = N * num_patches

    # ---- padded / tiled geometry (MXU & lane aligned) ----
    DIN_PAD = _round_up(d_in, 128)
    COUT_PAD = _round_up(c_out, 128)
    TILE_M = min(512, _round_up(M, 8))     # largest row tile up to 512
    M_pad = _round_up(M, TILE_M)

    # ---- inputs: patchify, mask flags, masked token (bf16, zero padded) ----
    patches = patchify_nhwc(x, patch_size).reshape(M, d_in).astype(jnp.bfloat16)
    patches_p = jnp.pad(patches, ((0, M_pad - M), (0, DIN_PAD - d_in)))

    maskf = mask_flags.reshape(M, 1).astype(jnp.float32)
    maskf_p = jnp.pad(maskf, ((0, M_pad - M), (0, 0)))

    token = masked_token.reshape(1, d_in).astype(jnp.bfloat16)
    token_p = jnp.pad(token, ((0, 0), (0, DIN_PAD - d_in)))

    # ---- fuse the two linear layers: W = Wenc @ Wdec, b = benc @ Wdec + bdec
    # conv weight (dim, C, ps, ps) -> (d_in, dim) with (i, j, c) ordering
    wenc = w_enc.transpose(0, 2, 3, 1).reshape(dim, d_in).T          # (d_in, dim)
    wdec = w_dec.reshape(c_out, dim).T                               # (dim, c_out)
    w_fused = jnp.dot(wenc, wdec, preferred_element_type=jnp.float32)  # (d_in, c_out)
    b_fused = jnp.dot(b_enc.reshape(1, dim), wdec) + b_dec.reshape(1, c_out)

    w_p = jnp.pad(w_fused, ((0, DIN_PAD - d_in), (0, COUT_PAD - c_out))
                  ).astype(jnp.bfloat16)
    b_p = jnp.pad(b_fused.astype(jnp.float32),
                  ((0, 0), (0, COUT_PAD - c_out)))

    # ---- tiled, pipelined pallas_call over the row axis ----
    out = pl.pallas_call(
        mae_kernel,
        out_shape=jax.ShapeDtypeStruct((M_pad, COUT_PAD), jnp.float32),
        grid=(M_pad // TILE_M,),
        in_specs=[
            pl.BlockSpec((TILE_M, DIN_PAD), lambda i: (i, 0)),   # patches (streamed)
            pl.BlockSpec((TILE_M, 1), lambda i: (i, 0)),         # mask flags (streamed)
            pl.BlockSpec((1, DIN_PAD), lambda i: (0, 0)),        # token (resident)
            pl.BlockSpec((DIN_PAD, COUT_PAD), lambda i: (0, 0)), # fused W (resident)
            pl.BlockSpec((1, COUT_PAD), lambda i: (0, 0)),       # fused b (resident)
        ],
        out_specs=pl.BlockSpec((TILE_M, COUT_PAD), lambda i: (i, 0)),
        compiler_params=pltpu.CompilerParams(
            dimension_semantics=("parallel",),       # rows independent -> megacore
            vmem_limit_bytes=32 * 1024 * 1024,       # explicit; safe on 64 MiB v7x
        ),
    )(patches_p, maskf_p, token_p, w_p, b_p)

    # strip padding; decoder output permute(0,2,3,1): NCHW -> NHWC over the grid
    return out[:M, :c_out].reshape(N, Hp, Wp, c_out)


# ------------------------------ reference ----------------------------------
def mae_forward_ref(x, mask_flags, masked_token, w_enc, b_enc, w_dec, b_dec,
                    patch_size):
    """Pure-JAX f32 reference mirroring the PyTorch semantics (unfused)."""
    N, H, W, C = x.shape
    Hp, Wp = H // patch_size, W // patch_size
    d_in = patch_size * patch_size * C
    dim = w_enc.shape[0]
    c_out = w_dec.shape[0]

    patches = patchify_nhwc(x, patch_size)                      # (N, P, d_in)
    m = mask_flags[..., None].astype(jnp.float32)
    tok = masked_token.reshape(1, 1, d_in)
    patches = patches * (1.0 - m) + m * tok                     # masking

    wenc = w_enc.transpose(0, 2, 3, 1).reshape(dim, d_in)
    emb = jnp.einsum('npd,ed->npe', patches, wenc) + b_enc      # encoder conv
    wdec = w_dec.reshape(c_out, dim)
    out = jnp.einsum('npe,ce->npc', emb, wdec) + b_dec          # decoder 1x1
    return out.reshape(N, Hp, Wp, c_out)


# --------------------------------- main -------------------------------------
if __name__ == "__main__":
    # small shapes consistent with the module
    N, H, W, C = 2, 16, 16, 4
    patch_size = 4
    patches_each_dim = H // patch_size            # 4
    num_patches = patches_each_dim ** 2           # 16
    masked_ratio = 0.75
    num_masked = int(masked_ratio * num_patches)  # 12
    dim = patch_size * patch_size * C             # 64 (required by masked_token broadcast)
    c_out = C

    key = jax.random.PRNGKey(0)
    k_img, k_tok, k_we, k_be, k_wd, k_bd, k_shuf = jax.random.split(key, 7)

    x = jax.random.normal(k_img, (N, H, W, C), jnp.float32)
    masked_token = jax.random.normal(k_tok, (1, 1, dim), jnp.float32)
    w_enc = jax.random.normal(k_we, (dim, C, patch_size, patch_size), jnp.float32) * 0.05
    b_enc = jax.random.normal(k_be, (dim,), jnp.float32) * 0.05
    w_dec = jax.random.normal(k_wd, (c_out, dim, 1, 1), jnp.float32) * 0.05
    b_dec = jax.random.normal(k_bd, (c_out,), jnp.float32) * 0.05

    # shuffle_indices = rand(N, P).argsort(); first num_masked are masked
    rand = jax.random.uniform(k_shuf, (N, num_patches))
    shuffle_indices = jnp.argsort(rand, axis=-1)
    mask_ind = shuffle_indices[:, :num_masked]
    mask_flags = jnp.zeros((N, num_patches), jnp.float32)
    mask_flags = mask_flags.at[jnp.arange(N)[:, None], mask_ind].set(1.0)

    out = mae_forward(x, mask_flags, masked_token, w_enc, b_enc, w_dec, b_dec,
                      patch_size)
    out = jax.block_until_ready(out)

    ref = mae_forward_ref(x, mask_flags, masked_token, w_enc, b_enc, w_dec,
                          b_dec, patch_size)
    assert out.shape == (N, patches_each_dim, patches_each_dim, c_out)
    # bf16 matmul operands + fused enc/dec weight -> relaxed (but tight) tol
    assert jnp.allclose(out, ref, atol=2e-2, rtol=2e-2)

    print("KERNEL_OK")
</pallas_src>

<mosaic_0001>
module attributes {stable_mosaic.version = 11 : i64} {
  func.func @mae_kernel(%arg0: i32, %arg1: memref<32x128xbf16, #tpu.memory_space<vmem>>, %arg2: memref<32x1xf32, #tpu.memory_space<vmem>>, %arg3: memref<1x128xbf16, #tpu.memory_space<vmem>>, %arg4: memref<128x128xbf16, #tpu.memory_space<vmem>>, %arg5: memref<1x128xf32, #tpu.memory_space<vmem>>, %arg6: memref<32x128xf32, #tpu.memory_space<vmem>>) attributes {dimension_semantics = [#tpu.dimension_semantics<parallel>], iteration_bounds = array<i64: 1>, scalar_prefetch = 0 : i64, scratch_operands = 0 : i64, tpu.core_type = #tpu.core_type<tc>, window_params = [{transform_indices = @transform_0, window_bounds = array<i64: 32, 128>}, {transform_indices = @transform_1, window_bounds = array<i64: 32, 1>}, {pipeline_mode = #tpu.pipeline_mode<synchronous>, transform_indices = @transform_2, window_bounds = array<i64: 1, 128>}, {pipeline_mode = #tpu.pipeline_mode<synchronous>, transform_indices = @transform_3, window_bounds = array<i64: 128, 128>}, {pipeline_mode = #tpu.pipeline_mode<synchronous>, transform_indices = @transform_4, window_bounds = array<i64: 1, 128>}, {transform_indices = @transform_5, window_bounds = array<i64: 32, 128>}]} {
    %c0 = arith.constant 0 : index
    %c0_0 = arith.constant 0 : index
    %0 = vector.load %arg2[%c0, %c0_0] : memref<32x1xf32, #tpu.memory_space<vmem>>, vector<32x1xf32>
    %cst = arith.constant 0.000000e+00 : f32
    %1 = vector.broadcast %cst : f32 to vector<32x1xf32>
    %2 = arith.cmpf ogt, %0, %1 : vector<32x1xf32>
    %c0_1 = arith.constant 0 : index
    %c0_2 = arith.constant 0 : index
    %3 = vector.load %arg3[%c0_1, %c0_2] : memref<1x128xbf16, #tpu.memory_space<vmem>>, vector<1x128xbf16>
    %c0_3 = arith.constant 0 : index
    %c0_4 = arith.constant 0 : index
    %4 = vector.load %arg1[%c0_3, %c0_4] : memref<32x128xbf16, #tpu.memory_space<vmem>>, vector<32x128xbf16>
    %5 = vector.shape_cast %2 : vector<32x1xi1> to vector<32x1xi1>
    %6 = vector.broadcast %5 : vector<32x1xi1> to vector<32x128xi1>
    %7 = vector.shape_cast %3 : vector<1x128xbf16> to vector<1x128xbf16>
    %8 = vector.broadcast %7 : vector<1x128xbf16> to vector<32x128xbf16>
    %9 = arith.select %6, %8, %4 : vector<32x128xi1>, vector<32x128xbf16>
    %c0_5 = arith.constant 0 : index
    %c0_6 = arith.constant 0 : index
    %10 = vector.load %arg4[%c0_5, %c0_6] : memref<128x128xbf16, #tpu.memory_space<vmem>>, vector<128x128xbf16>
    %cst_7 = arith.constant dense<0.000000e+00> : vector<32x128xf32>
    %11 = tpu.matmul %9, %10, %cst_7 {dimension_numbers = #tpu.dot_dimension_numbers<[1], [0], [0], [1], [0, 0, 1, 1], [], []>} : vector<32x128xbf16>, vector<128x128xbf16>, vector<32x128xf32> -> vector<32x128xf32>
    %c0_8 = arith.constant 0 : index
    %c0_9 = arith.constant 0 : index
    %12 = vector.load %arg5[%c0_8, %c0_9] : memref<1x128xf32, #tpu.memory_space<vmem>>, vector<1x128xf32>
    %13 = vector.broadcast %12 : vector<1x128xf32> to vector<32x128xf32>
    %14 = arith.addf %11, %13 : vector<32x128xf32>
    %c0_10 = arith.constant 0 : index
    %c0_11 = arith.constant 0 : index
    %15 = vector.load %arg6[%c0_10, %c0_11] : memref<32x128xf32, #tpu.memory_space<vmem>>, vector<32x128xf32>
    tpu.vector_store %arg6[%c0_10, %c0_11], %14 {strides = array<i32>} : memref<32x128xf32, #tpu.memory_space<vmem>>, vector<32x128xf32>,
    return
  }
  func.func @transform_0(%arg0: i32) -> (i32, i32) {
    %c0_i32 = arith.constant 0 : i32
    %c0_i32_0 = arith.constant 0 : i32
    return %arg0, %c0_i32 : i32, i32
  }
  func.func @transform_1(%arg0: i32) -> (i32, i32) {
    %c0_i32 = arith.constant 0 : i32
    %c0_i32_0 = arith.constant 0 : i32
    return %arg0, %c0_i32 : i32, i32
  }
  func.func @transform_2(%arg0: i32) -> (i32, i32) {
    %c0_i32 = arith.constant 0 : i32
    %c0_i32_0 = arith.constant 0 : i32
    %c0_i32_1 = arith.constant 0 : i32
    return %c0_i32, %c0_i32_0 : i32, i32
  }
  func.func @transform_3(%arg0: i32) -> (i32, i32) {
    %c0_i32 = arith.constant 0 : i32
    %c0_i32_0 = arith.constant 0 : i32
    %c0_i32_1 = arith.constant 0 : i32
    return %c0_i32, %c0_i32_0 : i32, i32
  }
  func.func @transform_4(%arg0: i32) -> (i32, i32) {
    %c0_i32 = arith.constant 0 : i32
    %c0_i32_0 = arith.constant 0 : i32
    %c0_i32_1 = arith.constant 0 : i32
    return %c0_i32, %c0_i32_0 : i32, i32
  }
  func.func @transform_5(%arg0: i32) -> (i32, i32) {
    %c0_i32 = arith.constant 0 : i32
    %c0_i32_0 = arith.constant 0 : i32
    return %arg0, %c0_i32 : i32, i32
  }
}

</mosaic_0001>

<llo_original>
// kernel: mae_forward.1
$region0: #{mae_forward.1}
  #allocation0 [shape = 'u32[]', space=smem, size = 0x4, offset = 0x4, fixed_abs, tag = 'smem constant byte address 0x4 - core index']
  #allocation1 [shape = 'u32[144,128]{1,0:T(1,128)}', space=vmem, size = 0x12000, scoped, tag = 'internal scratch']
  %s0 = inlined_call_operand.vmem [shape: bf16[32,128], index: 0, kind: input, shape index: {}]
  %s1 = inlined_call_operand.vmem [shape: f32[32,1], index: 1, kind: input, shape index: {}]
  %s2 = inlined_call_operand.vmem [shape: bf16[1,128], index: 2, kind: input, shape index: {}]
  %s3 = inlined_call_operand.vmem [shape: bf16[128,128], index: 3, kind: input, shape index: {}]
  %s4 = inlined_call_operand.vmem [shape: f32[1,128], index: 4, kind: input, shape index: {}]
  %s5 = inlined_call_operand.hbm [shape: f32[32,128], index: 5, kind: output, shape index: {}]
  %s6 = sld [smem:[#allocation0]]
  $region30: #{mae_forward.1} parent=0
    _
  %s8 = ssub.s32 1, %s6
  %s9 = scalar_select 0, %s8, %s6
  $region1: #{mae_forward.1} parent=0
    #allocation2 [shape = 'u8[16384]{0}', space=vmem, size = 0x4000, scoped, tag = 'output window, operand 0, single buffered']
    #allocation3 [shape = 's32[1]{0}', space=sflag, size = 0x4, scoped, tag = 'scoped memory for mae_forward.1']
    %10 = vsyncpa [#allocation3], 0
    // Predicated region
    $region2: #{mae_forward.1} parent=1 // pred_check
      _
    $region3: #{mae_forward.1} parent=1 // pred_check_branch
      %12 = sbr.rel (0) target = $region5
    $region4: #{mae_forward.1} parent=1 // pred_region
      _
    $region5: #{mae_forward.1} parent=1 // pred_fallthru
      _
    // Predicated region
    $region6: #{mae_forward.1} parent=1 // pred_check
      _
    $region7: #{mae_forward.1} parent=1 // pred_check_branch
      %14 = sbr.rel (0) target = $region9
    $region8: #{mae_forward.1} parent=1 // pred_region
      _
    $region9: #{mae_forward.1} parent=1 // pred_fallthru
      _
    // Predicated region
    $region10: #{mae_forward.1} parent=1 // pred_check
      _
    $region11: #{mae_forward.1} parent=1 // pred_check_branch
      %16 = sbr.rel (0) target = $region13
    $region12: #{mae_forward.1} parent=1 // pred_region
      _
    $region13: #{mae_forward.1} parent=1 // pred_fallthru
      _
    // Predicated region
    $region14: #{mae_forward.1} parent=1 // pred_check
      _
    $region15: #{mae_forward.1} parent=1 // pred_check_branch
      %18 = sbr.rel (0) target = $region17
    $region16: #{mae_forward.1} parent=1 // pred_region
      _
    $region17: #{mae_forward.1} parent=1 // pred_fallthru
      _
    // Predicated region
    $region18: #{mae_forward.1} parent=1 // pred_check
      _
    $region19: #{mae_forward.1} parent=1 // pred_check_branch
      %20 = sbr.rel (0) target = $region21
    $region20: #{mae_forward.1} parent=1 // pred_region
      _
    $region21: #{mae_forward.1} parent=1 // pred_fallthru
      _
    %v24 = vld [vmem:[%s1] sm:$0xff]
    %v25 = vld [vmem:[%s1 + $0x8] sm:$0xff]
    %v26 = vld [vmem:[%s1 + $0x10] sm:$0xff]
    %v27 = vld [vmem:[%s1 + $0x18] sm:$0xff]
    %vm28 = vcmp.gt.f32.partialorder %v24, 0.0
    %vm29 = vcmp.gt.f32.partialorder %v25, 0.0
    %vm30 = vcmp.gt.f32.partialorder %v26, 0.0
    %vm31 = vcmp.gt.f32.partialorder %v27, 0.0
    %v32 = vld [vmem:[%s2] sm:$0x1]
    %v33 = vld [vmem:[%s0] sm:$0xf]
    %v34 = vld [vmem:[%s0 + $0x4] sm:$0xf]
    %v35 = vld [vmem:[%s0 + $0x8] sm:$0xf]
    %v36 = vld [vmem:[%s0 + $0xc] sm:$0xf]
    %v37 = vsel %vm28, 1, 0
    %v38 = vsel %vm29, 1, 0
    %v39 = vsel %vm30, 1, 0
    %v40 = vsel %vm31, 1, 0
    %41 = vset.pattern.permute.xlu0 0
    %42 = vperm.xlu0 %41, %v37
    %v43 = vpop.permute.xlu0 %42
    %44 = vset.pattern.permute.xlu0 0
    %45 = vperm.xlu0 %44, %v38
    %v46 = vpop.permute.xlu0 %45
    %47 = vset.pattern.permute.xlu0 0
    %48 = vperm.xlu0 %47, %v39
    %v49 = vpop.permute.xlu0 %48
    %50 = vset.pattern.permute.xlu0 0
    %51 = vperm.xlu0 %50, %v40
    %v52 = vpop.permute.xlu0 %51
    %vm53 = vcmp.eq.s32.totalorder %v43, 1
    %vm54 = vcmp.eq.s32.totalorder %v46, 1
    %vm55 = vcmp.eq.s32.totalorder %v49, 1
    %vm56 = vcmp.eq.s32.totalorder %v52, 1
    %v58 = vpack.i.b16 %v32, %v32
    %v60 = vlaneseq
    %v61 = vshrl.u32 %v60, 7
    %v62 = vsub.s32 0, %v61
    %v63 = vrot.slane %v58, %v62
    %vm64 = vmpackc.low %vm53, %vm53
    %vm65 = vmpackc.low %vm54, %vm54
    %vm66 = vmpackc.low %vm55, %vm55
    %vm67 = vmpackc.low %vm56, %vm56
    %v68 = vsel %vm64, 65537, 0
    %v69 = vsel %vm65, 65537, 0
    %v70 = vsel %vm66, 65537, 0
    %v71 = vsel %vm67, 65537, 0
    %v72 = vunpack.c.l.b16 %v68
    %v73 = vunpack.c.l.b16 %v69
    %v74 = vunpack.c.l.b16 %v70
    %v75 = vunpack.c.l.b16 %v71
    %v76 = vpack.c.b16 %v73, %v72
    %v77 = vpack.c.b16 %v75, %v74
    %vm78 = vcmp.ne.s16.totalorder %v76, 0
    %vm79 = vcmp.ne.s16.totalorder %v77, 0
    %v84 = vunpack.c.l.b16 %v33
    %v85 = vunpack.c.l.b16 %v34
    %v86 = vunpack.c.l.b16 %v35
    %v87 = vunpack.c.l.b16 %v36
    %v88 = vpack.c.b16 %v85, %v84
    %v89 = vpack.c.b16 %v87, %v86
    %v92 = vsel %vm78, %v63, %v88
    %v93 = vsel %vm79, %v63, %v89
    %v94 = vld [vmem:[%s3] sm:$0xf]
    %v95 = vld [vmem:[%s3 + $0x4] sm:$0xf]
    %v96 = vld [vmem:[%s3 + $0x8] sm:$0xf]
    %v97 = vld [vmem:[%s3 + $0xc] sm:$0xf]
    %v98 = vld [vmem:[%s3 + $0x10] sm:$0xf]
    %v99 = vld [vmem:[%s3 + $0x14] sm:$0xf]
    %v100 = vld [vmem:[%s3 + $0x18] sm:$0xf]
    %v101 = vld [vmem:[%s3 + $0x1c] sm:$0xf]
    %v102 = vld [vmem:[%s3 + $0x20] sm:$0xf]
    %v103 = vld [vmem:[%s3 + $0x24] sm:$0xf]
    %v104 = vld [vmem:[%s3 + $0x28] sm:$0xf]
    %v105 = vld [vmem:[%s3 + $0x2c] sm:$0xf]
    %v106 = vld [vmem:[%s3 + $0x30] sm:$0xf]
    %v107 = vld [vmem:[%s3 + $0x34] sm:$0xf]
    %v108 = vld [vmem:[%s3 + $0x38] sm:$0xf]
    %v109 = vld [vmem:[%s3 + $0x3c] sm:$0xf]
    %v110 = vld [vmem:[%s4] sm:$0x1]
    %v112 = vlaneseq
    %v113 = vshrl.u32 %v112, 7
    %v114 = vsub.s32 0, %v113
    %v115 = vrot.slane %v110, %v114
    %v133 = vunpack.c.l.b16 %v94
    %v134 = vunpack.c.l.b16 %v95
    %v135 = vunpack.c.l.b16 %v96
    %v136 = vunpack.c.l.b16 %v97
    %v137 = vunpack.c.l.b16 %v98
    %v138 = vunpack.c.l.b16 %v99
    %v139 = vunpack.c.l.b16 %v100
    %v140 = vunpack.c.l.b16 %v101
    %v141 = vunpack.c.l.b16 %v102
    %v142 = vunpack.c.l.b16 %v103
    %v143 = vunpack.c.l.b16 %v104
    %v144 = vunpack.c.l.b16 %v105
    %v145 = vunpack.c.l.b16 %v106
    %v146 = vunpack.c.l.b16 %v107
    %v147 = vunpack.c.l.b16 %v108
    %v148 = vunpack.c.l.b16 %v109
    %v149 = vpack.c.b16 %v134, %v133
    %v150 = vpack.c.b16 %v136, %v135
    %v151 = vpack.c.b16 %v138, %v137
    %v152 = vpack.c.b16 %v140, %v139
    %v153 = vpack.c.b16 %v142, %v141
    %v154 = vpack.c.b16 %v144, %v143
    %v155 = vpack.c.b16 %v146, %v145
    %v156 = vpack.c.b16 %v148, %v147
    %165 = vmatprep.subr.bf16.mxu0 0
    %166 = vmatpush1.bf16.msra.mxu0 %v156
    %167 = vmatprep.subr.bf16.mxu0 0
    %168 = vmatpush1.bf16.msra.mxu0 %v155
    %169 = vmatprep.subr.bf16.mxu0 0
    %170 = vmatpush1.bf16.msra.mxu0 %v154
    %171 = vmatprep.subr.bf16.mxu0 0
    %172 = vmatpush1.bf16.msra.mxu0 %v153
    %173 = vmatprep.subr.bf16.mxu0 0
    %174 = vmatpush1.bf16.msra.mxu0 %v152
    %175 = vmatprep.subr.bf16.mxu0 0
    %176 = vmatpush1.bf16.msra.mxu0 %v151
    %177 = vmatprep.subr.bf16.mxu0 0
    %178 = vmatpush1.bf16.msra.mxu0 %v150
    %179 = vmatprep.subr.bf16.mxu0 0
    %180 = vmatpush1.bf16.msra.mxu0 %v149
    %181 = vmatprep.subr.bf16.mxu0 0
    %182 = vmatpush2.bf16.msra.mxu0 0
    %183 = vmatprep.subr.bf16.mxu0 0
    %184 = vmatpush2.bf16.msra.mxu0 0
    %185 = vmatprep.subr.bf16.mxu0 0
    %186 = vmatpush2.bf16.msra.mxu0 0
    %187 = vmatprep.subr.bf16.mxu0 0
    %188 = vmatpush2.bf16.msra.mxu0 0
    %189 = vmatprep.subr.bf16.mxu0 0
    %190 = vmatpush2.bf16.msra.mxu0 0
    %191 = vmatprep.subr.bf16.mxu0 0
    %192 = vmatpush2.bf16.msra.mxu0 0
    %193 = vmatprep.subr.bf16.mxu0 0
    %194 = vmatpush2.bf16.msra.mxu0 0
    %195 = vmatprep.subr.bf16.mxu0 0
    %196 = vmatpush2.bf16.msra.mxu0 0
    %197 = vmatprep.mubr.bf16.mxu0 0
    %198 = vmatmul.mubr.bf16.gmra.mxu0 %v92
    %v199 = vpop.f32.mrf.mxu0
    %v200 = vadd.f32 %v115, %v199
    %v201 = vpop.f32.mrf.mxu0
    %v202 = vpop.f32.mrf.mxu0
    %v203 = vadd.f32 %v115, %v202
    %v204 = vpop.f32.mrf.mxu0
    %205 = vmatprep.mubr.bf16.mxu0 0
    %206 = vmatmul.mubr.bf16.gmra.mxu0 %v93
    %v207 = vpop.f32.mrf.mxu0
    %v208 = vadd.f32 %v115, %v207
    %v209 = vpop.f32.mrf.mxu0
    %v210 = vpop.f32.mrf.mxu0
    %v211 = vadd.f32 %v115, %v210
    %v212 = vpop.f32.mrf.mxu0
    %213 = vdwg.mxu0
    %214 = vst [vmem:[#allocation2] sm:$0xff] %v200
    %215 = vst [vmem:[#allocation2 + $0x8] sm:$0xff] %v203
    %216 = vst [vmem:[#allocation2 + $0x10] sm:$0xff] %v208
    %217 = vst [vmem:[#allocation2 + $0x18] sm:$0xff] %v211
    // Predicated region
    $region22: #{mae_forward.1} parent=1 // pred_check
      _
    $region23: #{mae_forward.1} parent=1 // pred_check_branch
      %219 = sbr.rel (0) target = $region25
    $region24: #{mae_forward.1} parent=1 // pred_region
      %s221 = ssub.s32 512, 512
      %222 = vsyncadd [#allocation3], %s221
      %s223 = sshll.u32 [#allocation2], 4
      %s224 = int_to_ptr.vmem [resolvable:$true] %s223
      %229 = dma.vmem_to_hbm [thread:$0]  %s224, 512, %s5, [#allocation3], 128, 128, 8
    $region25: #{mae_forward.1} parent=1 // pred_fallthru
      _
    // Predicated region
    $region26: #{mae_forward.1} parent=1 // pred_check
      _
    $region27: #{mae_forward.1} parent=1 // pred_check_branch
      %231 = sbr.rel (0) target = $region29
    $region28: #{mae_forward.1} parent=1 // pred_region
      %232 = dma.done [#allocation3], 512
    $region29: #{mae_forward.1} parent=1 // pred_fallthru
      _
    %233 = vsyncpa [#allocation3], 1

</llo_original>
